<compile_context>
chip_gen: v7x
topology: tpu7x:2x2x1
jax: 0.10.0
libtpu: 0.0.40
codegen_flags: <defaults>
</compile_context>

<pallas_src>
import jax
import jax.numpy as jnp
from jax.experimental import pallas as pl
from jax.experimental.pallas import tpu as pltpu


_TARGET_BLOCK_BYTES = 4 << 20   # ~4 MiB per operand per block (in+out double-buffered ~ 16 MiB)
_VMEM_LIMIT_BYTES = 32 << 20    # headroom on v5e/v6e (128 MiB) and safely under v7x (64 MiB)
_MIN_PALLAS_ELEMS = 1 << 15     # below this, pallas_call fixed overhead dominates; let XLA fuse
_COL_CANDIDATES = (1024, 512, 256, 128)   # lane-dense last dims (unmasked vst)


def _is_pre_v6_tpu() -> bool:
    """True on chips without a bf16 VPU path (v2-v5): compute in f32 there."""
    try:
        kind = jax.devices()[0].device_kind.lower()
        return any(tag in kind for tag in ("v2", "v3", "v4", "v5"))
    except Exception:
        return False


def _make_myfr_kernel(compute_dtype):
    def kernel(x_ref, o_ref):
        x = x_ref[...].astype(compute_dtype)            # no-op when dtypes match
        r6 = jnp.clip(x + 3.0, 0.0, 6.0)                # relu6(x + 3)
        y = jnp.minimum(x * r6 * (1.0 / 6.0), 8.0)      # clamp(..., max=8)
        o_ref[...] = y.astype(o_ref.dtype)
    return kernel


def _myfr_jax(x: jnp.ndarray) -> jnp.ndarray:
    """Pure-JAX reference / fallback path (XLA fuses this into ~1R+1W)."""
    xf = x.astype(jnp.float32)
    r6 = jnp.clip(xf + 3.0, 0.0, 6.0)
    return jnp.minimum(xf * r6 * (1.0 / 6.0), 8.0).astype(x.dtype)


def myfr(x: jnp.ndarray, *,
         min_pallas_elems: int = _MIN_PALLAS_ELEMS,
         donate_input: bool = False) -> jnp.ndarray:
    """Elementwise MyFR activation. Accepts any shape; runs on TPU via Pallas."""
    n = x.size
    if n == 0 or n < min_pallas_elems:
        return _myfr_jax(x)

    # Pick the widest lane-dense column count that divides n exactly, so we
    # never pad (pad + tail-slice would each cost a full extra HBM pass).
    cols = next((c for c in _COL_CANDIDATES if n % c == 0), None)
    if cols is None:
        # Non-128-divisible sizes: the fused XLA elementwise kernel is already
        # bandwidth-optimal, so skip Pallas instead of paying pad/slice copies.
        return _myfr_jax(x)

    orig_shape = x.shape
    dtype = x.dtype
    itemsize = jnp.dtype(dtype).itemsize
    rows = n // cols

    # dtype-aware tile: keep the block ~4 MiB in *bytes*, sublane-aligned.
    tile_rows = max(8, (_TARGET_BLOCK_BYTES // (cols * itemsize)) // 8 * 8)

    if rows <= tile_rows:
        if rows <= 8:
            tile_rows = rows        # single tiny block (block dim == full dim)
        else:
            # Split mid-size inputs into two blocks so v7x's two TensorCores
            # both get work ("parallel" axis shards the grid across cores).
            tile_rows = (((rows + 1) // 2) + 7) // 8 * 8

    grid = (pl.cdiv(rows, tile_rows),)   # partial last block: OOB writes are masked

    x2d = x.reshape(rows, cols)          # exact reshape: no pad, no tail slice
    compute_dtype = (jnp.bfloat16
                     if (dtype == jnp.bfloat16 and not _is_pre_v6_tpu())
                     else jnp.float32)

    out2d = pl.pallas_call(
        _make_myfr_kernel(compute_dtype),
        out_shape=jax.ShapeDtypeStruct((rows, cols), dtype),
        grid=grid,
        in_specs=[pl.BlockSpec((tile_rows, cols), lambda i: (i, 0))],
        out_specs=pl.BlockSpec((tile_rows, cols), lambda i: (i, 0)),
        compiler_params=pltpu.CompilerParams(
            dimension_semantics=("parallel",),     # v7x: shard grid across both TCs
            vmem_limit_bytes=_VMEM_LIMIT_BYTES,    # 4 MiB blocks x 2 bufs x (in+out) fits everywhere
        ),
        cost_estimate=pl.CostEstimate(
            flops=6 * n,                            # add, 2x clip bounds, 2 muls, min
            transcendentals=0,
            bytes_accessed=2 * n * itemsize,        # exact 1R + 1W
        ),
        # With the no-pad path the alias recycles the caller's buffer directly;
        # only enable when the caller is done with x.
        input_output_aliases={0: 0} if donate_input else {},
    )(x2d)

    return out2d.reshape(orig_shape)


if __name__ == "__main__":
    key = jax.random.PRNGKey(0)

    # Small NCHW input (PyTorch convention), consistent with the module.
    x = jax.random.normal(key, (2, 4, 16, 16), dtype=jnp.float32) * 5.0
    ref = _myfr_jax(x)
    out = jax.block_until_ready(myfr(x, min_pallas_elems=0))   # force Pallas path
    assert out.shape == x.shape and out.dtype == x.dtype
    assert jnp.allclose(out, ref, atol=1e-6, rtol=1e-6), "f32 mismatch vs reference"

    # Multi-block grid with a partial last block (no padding, no tail slice).
    x_big = jax.random.normal(jax.random.PRNGKey(1), (2, 3, 7, 13 * 1024),
                              dtype=jnp.float32) * 5.0
    out_big = jax.block_until_ready(myfr(x_big))
    assert jnp.allclose(out_big, _myfr_jax(x_big), atol=1e-6, rtol=1e-6), \
        "tiled / partial-block path mismatch vs reference"

    # bf16 path: HBM traffic stays bf16; compute stays bf16 on v6e/v7x.
    x_bf16 = (jax.random.normal(jax.random.PRNGKey(2), (2, 8, 32, 32)) * 5.0
              ).astype(jnp.bfloat16)
    out_bf16 = jax.block_until_ready(myfr(x_bf16, min_pallas_elems=0))
    assert out_bf16.dtype == jnp.bfloat16
    assert float(jnp.max(jnp.abs(out_bf16.astype(jnp.float32)
                                 - _myfr_jax(x_bf16).astype(jnp.float32)))) < 0.1, \
        "bf16 mismatch vs reference"

    # Non-128-divisible size falls back to the fused XLA path (no extra copies).
    x_odd = jax.random.normal(jax.random.PRNGKey(3), (2, 3, 5, 7),
                              dtype=jnp.float32) * 5.0
    out_odd = jax.block_until_ready(myfr(x_odd, min_pallas_elems=0))
    assert jnp.allclose(out_odd, _myfr_jax(x_odd), atol=1e-6, rtol=1e-6)

    print("KERNEL_OK")
</pallas_src>

<mosaic_0001>
module attributes {stable_mosaic.version = 11 : i64} {
  func.func @kernel(%arg0: i32, %arg1: memref<2x1024xf32, #tpu.memory_space<vmem>>, %arg2: memref<2x1024xf32, #tpu.memory_space<vmem>>) attributes {dimension_semantics = [#tpu.dimension_semantics<parallel>], iteration_bounds = array<i64: 1>, scalar_prefetch = 0 : i64, scratch_operands = 0 : i64, tpu.core_type = #tpu.core_type<tc>, window_params = [{transform_indices = @transform_0, window_bounds = array<i64: 2, 1024>}, {transform_indices = @transform_1, window_bounds = array<i64: 2, 1024>}]} {
    %c0 = arith.constant 0 : index
    %c0_0 = arith.constant 0 : index
    %0 = vector.load %arg1[%c0, %c0_0] : memref<2x1024xf32, #tpu.memory_space<vmem>>, vector<2x1024xf32>
    %cst = arith.constant 3.000000e+00 : f32
    %1 = vector.broadcast %cst : f32 to vector<2x1024xf32>
    %2 = arith.addf %0, %1 : vector<2x1024xf32>
    %cst_1 = arith.constant 0.000000e+00 : f32
    %cst_2 = arith.constant 6.000000e+00 : f32
    %3 = vector.broadcast %cst_1 : f32 to vector<2x1024xf32>
    %4 = arith.maximumf %3, %2 : vector<2x1024xf32>
    %5 = vector.broadcast %cst_2 : f32 to vector<2x1024xf32>
    %6 = arith.minimumf %5, %4 : vector<2x1024xf32>
    %7 = arith.mulf %0, %6 : vector<2x1024xf32>
    %cst_3 = arith.constant 0.166666672 : f32
    %8 = vector.broadcast %cst_3 : f32 to vector<2x1024xf32>
    %9 = arith.mulf %7, %8 : vector<2x1024xf32>
    %cst_4 = arith.constant 8.000000e+00 : f32
    %10 = vector.broadcast %cst_4 : f32 to vector<2x1024xf32>
    %11 = arith.minimumf %9, %10 : vector<2x1024xf32>
    %c0_5 = arith.constant 0 : index
    %c0_6 = arith.constant 0 : index
    %12 = vector.load %arg2[%c0_5, %c0_6] : memref<2x1024xf32, #tpu.memory_space<vmem>>, vector<2x1024xf32>
    tpu.vector_store %arg2[%c0_5, %c0_6], %11 {strides = array<i32>} : memref<2x1024xf32, #tpu.memory_space<vmem>>, vector<2x1024xf32>,
    return
  }
  func.func @transform_0(%arg0: i32) -> (i32, i32) {
    %c0_i32 = arith.constant 0 : i32
    %c0_i32_0 = arith.constant 0 : i32
    return %arg0, %c0_i32 : i32, i32
  }
  func.func @transform_1(%arg0: i32) -> (i32, i32) {
    %c0_i32 = arith.constant 0 : i32
    %c0_i32_0 = arith.constant 0 : i32
    return %arg0, %c0_i32 : i32, i32
  }
}

</mosaic_0001>

<llo_original>
// kernel: tpu_custom_call.1
$region0: #{tpu_custom_call.1}
  #allocation0 [shape = 'u32[]', space=smem, size = 0x4, offset = 0x4, fixed_abs, tag = 'smem constant byte address 0x4 - core index']
  #allocation1 [shape = 'u32[144,128]{1,0:T(1,128)}', space=vmem, size = 0x12000, scoped, tag = 'internal scratch']
  %s0 = inlined_call_operand.hbm [shape: f32[2,1024], index: 0, kind: input, shape index: {}]
  %s1 = inlined_call_operand.hbm [shape: f32[2,1024], index: 1, kind: output, shape index: {}]
  %s2 = sld [smem:[#allocation0]]
  $region18: #{tpu_custom_call.1} parent=0
    _
  %s4 = ssub.s32 1, %s2
  %s5 = scalar_select 0, %s4, %s2
  $region1: #{tpu_custom_call.1} parent=0
    #allocation2 [shape = 'u8[8192]{0}', space=vmem, size = 0x2000, scoped, tag = 'input window, operand 0, single buffered']
    #allocation3 [shape = 's32[1]{0}', space=sflag, size = 0x4, scoped, tag = 'scoped memory for tpu_custom_call.1']
    #allocation4 [shape = 's32[1]{0}', space=sflag, size = 0x4, scoped, tag = 'scoped memory for tpu_custom_call.1']
    #allocation5 [shape = 'u8[8192]{0}', space=vmem, size = 0x2000, scoped, tag = 'output window, operand 0, single buffered']
    %6 = vsyncpa [#allocation3], 0
    %7 = vsyncpa [#allocation4], 0
    // Predicated region
    $region2: #{tpu_custom_call.1} parent=1 // pred_check
      _
    $region3: #{tpu_custom_call.1} parent=1 // pred_check_branch
      %9 = sbr.rel (0) target = $region5
    $region4: #{tpu_custom_call.1} parent=1 // pred_region
      %s11 = ssub.s32 256, 256
      %12 = vsyncadd [#allocation3], %s11
      %s14 = sshll.u32 [#allocation2], 4
      %s15 = int_to_ptr.vmem [resolvable:$true] %s14
      %17 = dma.hbm_to_vmem [thread:$0]  %s0, 256, %s15, [#allocation3]
    $region5: #{tpu_custom_call.1} parent=1 // pred_fallthru
      _
    // Predicated region
    $region6: #{tpu_custom_call.1} parent=1 // pred_check
      _
    $region7: #{tpu_custom_call.1} parent=1 // pred_check_branch
      %19 = sbr.rel (0) target = $region9
    $region8: #{tpu_custom_call.1} parent=1 // pred_region
      %20 = dma.done [#allocation3], 256
    $region9: #{tpu_custom_call.1} parent=1 // pred_fallthru
      _
    %v21 = vld [vmem:[#allocation2] sm:$0xff]
    %v22 = vld [vmem:[#allocation2 + $0x8] sm:$0xff]
    %v23 = vadd.f32 %v21, 3.0
    %v24 = vadd.f32 %v22, 3.0
    %v25 = vmax.f32 %v23, 0.0
    %v26 = vmax.f32 %v24, 0.0
    %v27 = vmin.f32 %v25, 6.0
    %v28 = vmin.f32 %v26, 6.0
    %v29 = vmul.f32 %v21, %v27
    %v30 = vmul.f32 %v22, %v28
    %v31 = vmul.f32 %v29, 0.16666667
    %v32 = vmul.f32 %v30, 0.16666667
    %v33 = vmin.f32 %v31, 8.0
    %v34 = vmin.f32 %v32, 8.0
    %35 = vst [vmem:[#allocation5] sm:$0xff] %v33
    %36 = vst [vmem:[#allocation5 + $0x8] sm:$0xff] %v34
    // Predicated region
    $region10: #{tpu_custom_call.1} parent=1 // pred_check
      _
    $region11: #{tpu_custom_call.1} parent=1 // pred_check_branch
      %38 = sbr.rel (0) target = $region13
    $region12: #{tpu_custom_call.1} parent=1 // pred_region
      %s40 = ssub.s32 256, 256
      %41 = vsyncadd [#allocation4], %s40
      %s43 = sshll.u32 [#allocation5], 4
      %s44 = int_to_ptr.vmem [resolvable:$true] %s43
      %46 = dma.vmem_to_hbm [thread:$0]  %s44, 256, %s1, [#allocation4]
    $region13: #{tpu_custom_call.1} parent=1 // pred_fallthru
      _
    // Predicated region
    $region14: #{tpu_custom_call.1} parent=1 // pred_check
      _
    $region15: #{tpu_custom_call.1} parent=1 // pred_check_branch
      %48 = sbr.rel (0) target = $region17
    $region16: #{tpu_custom_call.1} parent=1 // pred_region
      %49 = dma.done [#allocation4], 256
    $region17: #{tpu_custom_call.1} parent=1 // pred_fallthru
      _
    %50 = vsyncpa [#allocation3], 1
    %51 = vsyncpa [#allocation4], 1

</llo_original>
